<compile_context>
chip_gen: v7x
topology: tpu7x:2x2x1
jax: 0.10.0
libtpu: 0.0.40
codegen_flags: <defaults>
</compile_context>

<pallas_src>
import functools

import jax
import jax.numpy as jnp
from jax.experimental import pallas as pl
from jax.experimental.pallas import tpu as pltpu

BN_EPS = 1e-5


def _vmem_capacity_bytes():
    try:
        return int(pltpu.get_tpu_info().vmem_capacity_bytes)
    except Exception:
        return 64 * 1024 * 1024  # conservative fallback: v7x per-TensorCore VMEM


def _pick_row_tile(ho, br_budget, n_batch):
    """Output rows per grid step: a divisor of `ho` that is a multiple of 8 (or `ho`
    itself -> full-extent block), as large as the VMEM budget allows, keeping >=2 grid
    steps when batch == 1 so both v7x TensorCores have work."""
    cands = sorted({d for d in range(8, ho + 1, 8) if ho % d == 0} | {ho})
    feas = [d for d in cands if d <= br_budget]
    br = max(feas) if feas else cands[0]
    if n_batch == 1 and ho // br < 2:
        smaller = [d for d in cands if d < br and ho // d >= 2]
        if smaller:
            br = max(smaller)
    return br


def _take_even_lanes(x, factor, out_w):
    """x[..., 0::factor] (length out_w), using the most robust lowering available."""
    if out_w <= 64:
        # Small width (e.g. the demo): static single-lane slices + concat (rotate_half-style
        # ops, very well supported by Mosaic).
        parts = [x[..., j * factor:j * factor + 1] for j in range(out_w)]
        return jnp.concatenate(parts, axis=-1)
    # Larger widths: one reshape-split of the lane dim + minor-dim slice.
    return x.reshape(x.shape[:-1] + (out_w, factor))[..., 0]


def _downblock_kernel(x_ref, w_ref, b_ref, o_ref, *, cin, cout, br, wo, factor, use_mxu):
    # x_ref block: (1, Cin, br, factor*factor*wo).  Along the lane axis each "row" holds the
    # `factor` consecutive input image rows belonging to one output row (even row first).
    wp = factor * wo
    x = x_ref[0]                                        # (Cin, br, factor*wp)
    er = x[:, :, :wp]                                   # keep the even input rows (Cin, br, wp)
    xs = _take_even_lanes(er, factor, wo)               # keep even columns      (Cin, br, wo)

    if use_mxu:
        # Channel mix on the MXU with an f32 accumulator.
        # TODO(synk): cast w/xs to bf16 (f32 accum) on v6e/v7x for extra MXU headroom.
        y = jnp.dot(w_ref[...], xs.reshape(cin, br * wo),
                    preferred_element_type=jnp.float32)          # (Cout, br*wo)
        y = y.reshape(cout, br, wo)
    else:
        # Tiny channel count: the MXU would be >95% idle; short unrolled VPU MAC chain.
        w = w_ref[...]                                           # (Cout, Cin)
        y = jnp.zeros((cout, br, wo), jnp.float32)
        for c in range(cin):
            y = y + w[:, c:c + 1].reshape(cout, 1, 1) * xs[c:c + 1]
    y = y + b_ref[...]                                           # folded conv bias + BN shift
    o_ref[0] = jnp.maximum(y, 0.0).astype(o_ref.dtype)           # ReLU


def downblock_forward(x_nchw, params, *, factor=2):
    """x_nchw: (N, C, H, W) float32 -> (N, C, Ho, Wo) matching Conv2d(k=1, stride=factor)."""
    w_conv, b, gamma, beta, mean, var = params
    N, C, H, W = x_nchw.shape
    Cout = w_conv.shape[0]
    Ho = (H - 1) // factor + 1          # PyTorch conv output size (k=1, pad=0)
    Wo = (W - 1) // factor + 1
    Hp, Wp = Ho * factor, Wo * factor

    # Rare alignment pad (H/W not multiples of factor); padded rows/cols are never sampled.
    if (Hp, Wp) != (H, W):
        x_nchw = jnp.pad(x_nchw, ((0, 0), (0, 0), (0, Hp - H), (0, Wp - W)))

    # --- Fold BatchNorm (eval) + conv bias into the 1x1 conv weights (constant transform). ---
    scale = gamma * jax.lax.rsqrt(var + BN_EPS)                   # (Cout,)
    w_fold = w_conv[:, :, 0, 0] * scale[:, None]                  # (Cout, Cin)
    b_fold = ((b - mean) * scale + beta).reshape(Cout, 1, 1)      # (Cout, 1, 1)

    # Metadata-only reshape: one "row" = the `factor` input rows of one output row laid out
    # back-to-back on the lane axis, so a contiguous row-block maps to a contiguous output
    # row-block and the stride-`factor` subsample can be done entirely in VMEM.
    x_rows = x_nchw.reshape(N, C, Ho, factor * Wp)

    # --- Tile sizing from a per-generation VMEM budget --------------------------------
    itemsize = 4
    fixed = 2 * (Cout * C + Cout) * itemsize                      # dbl-buffered weight + bias
    per_row = itemsize * (2 * C * factor * Wp                     # input tile (dbl-buffered)
                          + 2 * Cout * Wo                         # output tile (dbl-buffered)
                          + 2 * C * Wp)                           # in-kernel temporaries
    cap = _vmem_capacity_bytes()
    budget = max(cap // 4, 4 << 20)
    br_budget = max(1, (budget - fixed) // per_row)
    br = _pick_row_tile(Ho, br_budget, N)
    vmem_limit = int(min(max(2 * (fixed + per_row * br) + (4 << 20), 16 << 20),
                         (cap * 3) // 4))

    use_mxu = C >= 16
    kernel = functools.partial(_downblock_kernel, cin=C, cout=Cout, br=br, wo=Wo,
                               factor=factor, use_mxu=use_mxu)

    grid = (N, Ho // br)
    cost = pl.CostEstimate(
        flops=2 * N * Cout * C * Ho * Wo,
        transcendentals=0,
        bytes_accessed=itemsize * (N * C * Ho * factor * Wp       # activation read
                                   + N * Cout * Ho * Wo           # activation write
                                   + Cout * C + Cout),            # folded weight + bias
    )

    out = pl.pallas_call(
        kernel,
        out_shape=jax.ShapeDtypeStruct((N, Cout, Ho, Wo), x_nchw.dtype),
        grid_spec=pltpu.PrefetchScalarGridSpec(
            num_scalar_prefetch=0,
            grid=grid,
            in_specs=[
                # Activation row-block of the (metadata-reshaped) original tensor.
                pl.BlockSpec((1, C, br, factor * Wp), lambda n, r: (n, 0, r, 0)),
                # Resident folded weight / bias (constant block index).
                pl.BlockSpec((Cout, C), lambda n, r: (0, 0)),
                pl.BlockSpec((Cout, 1, 1), lambda n, r: (0, 0, 0)),
            ],
            out_specs=pl.BlockSpec((1, Cout, br, Wo), lambda n, r: (n, 0, r, 0)),
        ),
        compiler_params=pltpu.CompilerParams(
            dimension_semantics=("parallel", "parallel"),
            vmem_limit_bytes=vmem_limit,
        ),
        cost_estimate=cost,
    )(x_rows, w_fold, b_fold)

    return out                                   # already (N, Cout, Ho, Wo); no un-pad slice


def init_params(key, C):
    """Deterministic params.  Conv2d(C, C, k=1) weight kept in PyTorch form (Cout, Cin, 1, 1)."""
    k1, k2, k3, k4, k5, k6 = jax.random.split(key, 6)
    w_conv = jax.random.normal(k1, (C, C, 1, 1), jnp.float32) * 0.1
    b = jax.random.normal(k2, (C,), jnp.float32) * 0.05
    gamma = 1.0 + 0.1 * jax.random.normal(k3, (C,), jnp.float32)
    beta = 0.05 * jax.random.normal(k4, (C,), jnp.float32)
    mean = 0.1 * jax.random.normal(k5, (C,), jnp.float32)
    var = jnp.abs(1.0 + 0.1 * jax.random.normal(k6, (C,), jnp.float32))
    return (w_conv, b, gamma, beta, mean, var)


def reference_forward(x_nchw, params, *, factor=2):
    """Pure-JAX reference mirroring PyTorch semantics (conv1x1 stride=factor + BN eval + ReLU)."""
    w_conv, b, gamma, beta, mean, var = params
    xs = x_nchw[:, :, ::factor, ::factor]                         # (N, C, Ho, Wo)
    w = w_conv[:, :, 0, 0]                                        # (Cout, Cin)
    y = jnp.einsum("oc,nchw->nohw", w, xs) + b[None, :, None, None]
    inv_std = gamma * jax.lax.rsqrt(var + BN_EPS)
    y = (y - mean[None, :, None, None]) * inv_std[None, :, None, None] + beta[None, :, None, None]
    return jnp.maximum(y, 0.0)


if __name__ == "__main__":
    key = jax.random.PRNGKey(0)
    kx, kp = jax.random.split(key)

    N, C, H, W = 2, 4, 16, 16
    x = jax.random.normal(kx, (N, C, H, W), jnp.float32)
    params = init_params(kp, C)

    out = downblock_forward(x, params, factor=2)
    out = jax.block_until_ready(out)

    ref = reference_forward(x, params, factor=2)
    assert out.shape == (N, C, H // 2, W // 2), out.shape
    assert jnp.allclose(out, ref, atol=1e-5, rtol=1e-5), float(jnp.max(jnp.abs(out - ref)))

    print("KERNEL_OK")
</pallas_src>

<mosaic_0001>
module attributes {stable_mosaic.version = 11 : i64} {
  func.func @_downblock_kernel(%arg0: i32, %arg1: i32, %arg2: memref<1x4x8x32xf32, #tpu.memory_space<vmem>>, %arg3: memref<4x4xf32, #tpu.memory_space<vmem>>, %arg4: memref<4x1x1xf32, #tpu.memory_space<vmem>>, %arg5: memref<1x4x8x8xf32, #tpu.memory_space<vmem>>) attributes {dimension_semantics = [#tpu.dimension_semantics<parallel>, #tpu.dimension_semantics<parallel>], iteration_bounds = array<i64: 2, 1>, scalar_prefetch = 0 : i64, scratch_operands = 0 : i64, tpu.core_type = #tpu.core_type<tc>, window_params = [{transform_indices = @transform_0, window_bounds = array<i64: 1, 4, 8, 32>}, {pipeline_mode = #tpu.pipeline_mode<synchronous>, transform_indices = @transform_1, window_bounds = array<i64: 4, 4>}, {pipeline_mode = #tpu.pipeline_mode<synchronous>, transform_indices = @transform_2, window_bounds = array<i64: 4, 1, 1>}, {transform_indices = @transform_3, window_bounds = array<i64: 1, 4, 8, 8>}]} {
    %c0 = arith.constant 0 : index
    %c0_0 = arith.constant 0 : index
    %c0_1 = arith.constant 0 : index
    %c0_2 = arith.constant 0 : index
    %0 = vector.load %arg2[%c0, %c0_0, %c0_1, %c0_2] : memref<1x4x8x32xf32, #tpu.memory_space<vmem>>, vector<1x4x8x32xf32>
    %1 = vector.shape_cast %0 : vector<1x4x8x32xf32> to vector<4x8x32xf32>
    %2 = vector.extract_strided_slice %1 {offsets = [0, 0, 0], sizes = [4, 8, 16], strides = [1, 1, 1]} : vector<4x8x32xf32> to vector<4x8x16xf32>
    %3 = vector.extract_strided_slice %2 {offsets = [0, 0, 0], sizes = [4, 8, 1], strides = [1, 1, 1]} : vector<4x8x16xf32> to vector<4x8x1xf32>
    %4 = vector.extract_strided_slice %2 {offsets = [0, 0, 2], sizes = [4, 8, 1], strides = [1, 1, 1]} : vector<4x8x16xf32> to vector<4x8x1xf32>
    %5 = vector.extract_strided_slice %2 {offsets = [0, 0, 4], sizes = [4, 8, 1], strides = [1, 1, 1]} : vector<4x8x16xf32> to vector<4x8x1xf32>
    %6 = vector.extract_strided_slice %2 {offsets = [0, 0, 6], sizes = [4, 8, 1], strides = [1, 1, 1]} : vector<4x8x16xf32> to vector<4x8x1xf32>
    %7 = vector.extract_strided_slice %2 {offsets = [0, 0, 8], sizes = [4, 8, 1], strides = [1, 1, 1]} : vector<4x8x16xf32> to vector<4x8x1xf32>
    %8 = vector.extract_strided_slice %2 {offsets = [0, 0, 10], sizes = [4, 8, 1], strides = [1, 1, 1]} : vector<4x8x16xf32> to vector<4x8x1xf32>
    %9 = vector.extract_strided_slice %2 {offsets = [0, 0, 12], sizes = [4, 8, 1], strides = [1, 1, 1]} : vector<4x8x16xf32> to vector<4x8x1xf32>
    %10 = vector.extract_strided_slice %2 {offsets = [0, 0, 14], sizes = [4, 8, 1], strides = [1, 1, 1]} : vector<4x8x16xf32> to vector<4x8x1xf32>
    %11 = tpu.concatenate %3, %4, %5, %6, %7, %8, %9, %10 in 2 : vector<4x8x1xf32>, vector<4x8x1xf32>, vector<4x8x1xf32>, vector<4x8x1xf32>, vector<4x8x1xf32>, vector<4x8x1xf32>, vector<4x8x1xf32>, vector<4x8x1xf32> -> vector<4x8x8xf32>
    %c0_3 = arith.constant 0 : index
    %c0_4 = arith.constant 0 : index
    %12 = vector.load %arg3[%c0_3, %c0_4] : memref<4x4xf32, #tpu.memory_space<vmem>>, vector<4x4xf32>
    %cst = arith.constant 0.000000e+00 : f32
    %13 = vector.broadcast %cst : f32 to vector<4x8x8xf32>
    %14 = vector.extract_strided_slice %12 {offsets = [0, 0], sizes = [4, 1], strides = [1, 1]} : vector<4x4xf32> to vector<4x1xf32>
    %15 = vector.shape_cast %14 : vector<4x1xf32> to vector<4x1x1xf32>
    %16 = vector.extract_strided_slice %11 {offsets = [0, 0, 0], sizes = [1, 8, 8], strides = [1, 1, 1]} : vector<4x8x8xf32> to vector<1x8x8xf32>
    %17 = vector.broadcast %15 : vector<4x1x1xf32> to vector<4x8x8xf32>
    %18 = vector.broadcast %16 : vector<1x8x8xf32> to vector<4x8x8xf32>
    %19 = arith.mulf %17, %18 : vector<4x8x8xf32>
    %20 = arith.addf %13, %19 : vector<4x8x8xf32>
    %21 = vector.extract_strided_slice %12 {offsets = [0, 1], sizes = [4, 1], strides = [1, 1]} : vector<4x4xf32> to vector<4x1xf32>
    %22 = vector.shape_cast %21 : vector<4x1xf32> to vector<4x1x1xf32>
    %23 = vector.extract_strided_slice %11 {offsets = [1, 0, 0], sizes = [1, 8, 8], strides = [1, 1, 1]} : vector<4x8x8xf32> to vector<1x8x8xf32>
    %24 = vector.broadcast %22 : vector<4x1x1xf32> to vector<4x8x8xf32>
    %25 = vector.broadcast %23 : vector<1x8x8xf32> to vector<4x8x8xf32>
    %26 = arith.mulf %24, %25 : vector<4x8x8xf32>
    %27 = arith.addf %20, %26 : vector<4x8x8xf32>
    %28 = vector.extract_strided_slice %12 {offsets = [0, 2], sizes = [4, 1], strides = [1, 1]} : vector<4x4xf32> to vector<4x1xf32>
    %29 = vector.shape_cast %28 : vector<4x1xf32> to vector<4x1x1xf32>
    %30 = vector.extract_strided_slice %11 {offsets = [2, 0, 0], sizes = [1, 8, 8], strides = [1, 1, 1]} : vector<4x8x8xf32> to vector<1x8x8xf32>
    %31 = vector.broadcast %29 : vector<4x1x1xf32> to vector<4x8x8xf32>
    %32 = vector.broadcast %30 : vector<1x8x8xf32> to vector<4x8x8xf32>
    %33 = arith.mulf %31, %32 : vector<4x8x8xf32>
    %34 = arith.addf %27, %33 : vector<4x8x8xf32>
    %35 = vector.extract_strided_slice %12 {offsets = [0, 3], sizes = [4, 1], strides = [1, 1]} : vector<4x4xf32> to vector<4x1xf32>
    %36 = vector.shape_cast %35 : vector<4x1xf32> to vector<4x1x1xf32>
    %37 = vector.extract_strided_slice %11 {offsets = [3, 0, 0], sizes = [1, 8, 8], strides = [1, 1, 1]} : vector<4x8x8xf32> to vector<1x8x8xf32>
    %38 = vector.broadcast %36 : vector<4x1x1xf32> to vector<4x8x8xf32>
    %39 = vector.broadcast %37 : vector<1x8x8xf32> to vector<4x8x8xf32>
    %40 = arith.mulf %38, %39 : vector<4x8x8xf32>
    %41 = arith.addf %34, %40 : vector<4x8x8xf32>
    %c0_5 = arith.constant 0 : index
    %c0_6 = arith.constant 0 : index
    %c0_7 = arith.constant 0 : index
    %42 = vector.load %arg4[%c0_5, %c0_6, %c0_7] : memref<4x1x1xf32, #tpu.memory_space<vmem>>, vector<4x1x1xf32>
    %43 = vector.broadcast %42 : vector<4x1x1xf32> to vector<4x8x8xf32>
    %44 = arith.addf %41, %43 : vector<4x8x8xf32>
    %cst_8 = arith.constant 0.000000e+00 : f32
    %45 = vector.broadcast %cst_8 : f32 to vector<4x8x8xf32>
    %46 = arith.maximumf %44, %45 : vector<4x8x8xf32>
    %c0_9 = arith.constant 0 : index
    %c0_10 = arith.constant 0 : index
    %c0_11 = arith.constant 0 : index
    %c0_12 = arith.constant 0 : index
    %47 = vector.load %arg5[%c0_9, %c0_10, %c0_11, %c0_12] : memref<1x4x8x8xf32, #tpu.memory_space<vmem>>, vector<1x4x8x8xf32>
    %48 = vector.shape_cast %47 : vector<1x4x8x8xf32> to vector<4x8x8xf32>
    %49 = vector.shape_cast %46 : vector<4x8x8xf32> to vector<1x4x8x8xf32>
    tpu.vector_store %arg5[%c0_9, %c0_10, %c0_11, %c0_12], %49 {strides = array<i32>} : memref<1x4x8x8xf32, #tpu.memory_space<vmem>>, vector<1x4x8x8xf32>,
    return
  }
  func.func @transform_0(%arg0: i32, %arg1: i32) -> (i32, i32, i32, i32) {
    %c0_i32 = arith.constant 0 : i32
    %c0_i32_0 = arith.constant 0 : i32
    %c0_i32_1 = arith.constant 0 : i32
    return %arg0, %c0_i32, %arg1, %c0_i32_0 : i32, i32, i32, i32
  }
  func.func @transform_1(%arg0: i32, %arg1: i32) -> (i32, i32) {
    %c0_i32 = arith.constant 0 : i32
    %c0_i32_0 = arith.constant 0 : i32
    %c0_i32_1 = arith.constant 0 : i32
    return %c0_i32, %c0_i32_0 : i32, i32
  }
  func.func @transform_2(%arg0: i32, %arg1: i32) -> (i32, i32, i32) {
    %c0_i32 = arith.constant 0 : i32
    %c0_i32_0 = arith.constant 0 : i32
    %c0_i32_1 = arith.constant 0 : i32
    %c0_i32_2 = arith.constant 0 : i32
    return %c0_i32, %c0_i32_0, %c0_i32_1 : i32, i32, i32
  }
  func.func @transform_3(%arg0: i32, %arg1: i32) -> (i32, i32, i32, i32) {
    %c0_i32 = arith.constant 0 : i32
    %c0_i32_0 = arith.constant 0 : i32
    %c0_i32_1 = arith.constant 0 : i32
    return %arg0, %c0_i32, %arg1, %c0_i32_0 : i32, i32, i32, i32
  }
}

</mosaic_0001>

<llo_original>
// kernel: tpu_custom_call.1
$region0: #{tpu_custom_call.1}
  #allocation0 [shape = 'u32[]', space=smem, size = 0x4, offset = 0x4, fixed_abs, tag = 'smem constant byte address 0x4 - core index']
  #allocation1 [shape = 'u32[144,128]{1,0:T(1,128)}', space=vmem, size = 0x12000, scoped, tag = 'internal scratch']
  %s0 = inlined_call_operand.hbm [shape: f32[2,4,8,32], index: 0, kind: input, shape index: {}]
  %s1 = inlined_call_operand.vmem [shape: f32[4,4], index: 1, kind: input, shape index: {}]
  %s2 = inlined_call_operand.vmem [shape: f32[4,1,1], index: 2, kind: input, shape index: {}]
  %s3 = inlined_call_operand.hbm [shape: f32[2,4,8,8], index: 3, kind: output, shape index: {}]
  %s4 = sld [smem:[#allocation0]]
  $region49: #{tpu_custom_call.1} parent=0
    _
  %s6 = ssub.s32 1, %s4
  %s7 = scalar_select 0, %s6, %s4
  $region1: #{tpu_custom_call.1} parent=0
    #allocation2 [shape = 'u8[32768]{0}', space=vmem, size = 0x8000, scoped, tag = 'input window, operand 0']
    #allocation3 [shape = 's32[2]{0}', space=sflag, size = 0x8, scoped, tag = 'scoped memory for tpu_custom_call.1']
    #allocation4 [shape = 's32[2]{0}', space=sflag, size = 0x8, scoped, tag = 'scoped memory for tpu_custom_call.1']
    #allocation5 [shape = 'u8[32768]{0}', space=vmem, size = 0x8000, scoped, tag = 'output window, operand 0']
    %8 = vsyncpa [#allocation3], 0
    %s9 = scalar_lea.sflag [#allocation3], 1
    %10 = vsyncpa %s9, 0
    %11 = vsyncpa [#allocation4], 0
    %s12 = scalar_lea.sflag [#allocation4], 1
    %13 = vsyncpa %s12, 0
    loop: start=0, step=1, limit=4
    $region2: #{tpu_custom_call.1} parent=1 // loop_pre_header
      _
    $region3: #{tpu_custom_call.1} parent=1 // loop_header
      %s15 = sphi 0, %s19
      %p16 = scmp.ge.s32.totalorder %s15, 4
      %s22 = sphi 0, %s34
      %s23 = sphi 0, %s30
      %s24 = sphi 0, %s22
      %s25 = sphi 0, %s23
      %s26 = sphi 0, %s24
      %s27 = sphi 0, %s25
      %s39 = sphi 0, %s41
      %s42 = sphi 0, %s39
      %s43 = sphi 0, %s42
      %s59 = sphi 0, %s43
      %s63 = sphi 0, %s63
      %s65 = sphi 0, %s63
      %s66 = sphi 0, %s65
      %s80 = sphi 0, %s66
      %s84 = sphi 0, %s84
      %s86 = sphi 0, %s84
      %s87 = sphi 0, %s86
      %s101 = sphi 0, %s87
      %s109 = sphi 0, %s111
      %s112 = sphi 0, %s109
      %s113 = sphi 0, %s112
      %s129 = sphi 0, %s113
    $region4: #{tpu_custom_call.1} parent=1 // loop_header_branch
      %18 = sbr.rel (%p16) target = $region8
    $region5: #{tpu_custom_call.1} parent=1 // loop_body
      %s20 = ssub.s32 %s15, 1
      %s21 = ssub.s32 %s15, 2
      %s28 = sadd.s32 1, %s23
      %p29 = scmp.ge.s32.totalorder %s28, 1
      %s30 = scalar_select %p29, 0, %s28
      %s31 = sadd.s32 1, %s22
      %s32 = scalar_select %p29, %s31, %s22
      %p33 = scmp.ge.s32.totalorder %s32, 2
      %s34 = scalar_select %p33, 0, %s32
      %s35 = ssub.s32 %s22, %s34
      %s36 = ssub.s32 %s23, %s30
      %s37 = sor.u32 %s35, %s36
      %p38 = scmp.eq.s32.totalorder %s37, 0
      %s40 = sadd.s32 %s39, 1
      %s41 = scalar_select %p38, %s39, %s40
      %p44 = pneg %p38
      %p45 = scmp.eq.s32.totalorder %s15, 1
      %p46 = por %p44, %p45
      %p47 = scmp.ne.s32.totalorder %s39, %s42
      %p48 = scmp.eq.s32.totalorder %s15, 0
      %p49 = por %p47, %p48
      %p50 = scmp.ne.s32.totalorder %s39, %s42
      %p51 = scmp.eq.s32.totalorder %s20, 1
      %p52 = por %p50, %p51
      %p53 = scmp.ne.s32.totalorder %s42, %s43
      %p54 = scmp.eq.s32.totalorder %s20, 0
      %p55 = por %p53, %p54
      %p56 = scmp.ne.s32.totalorder %s42, %s43
      %p57 = scmp.eq.s32.totalorder %s21, 1
      %p58 = por %p56, %p57
      %p60 = scmp.ne.s32.totalorder %s43, %s59
      %p61 = scmp.eq.s32.totalorder %s21, 0
      %p62 = por %p60, %p61
      %s64 = sadd.s32 %s63, 1
      %p67 = scmp.eq.s32.totalorder %s15, 1
      %p68 = scmp.ne.s32.totalorder %s63, %s65
      %p69 = scmp.eq.s32.totalorder %s15, 0
      %p70 = por %p68, %p69
      %p71 = scmp.ne.s32.totalorder %s63, %s65
      %p72 = scmp.eq.s32.totalorder %s20, 1
      %p73 = por %p71, %p72
      %p74 = scmp.ne.s32.totalorder %s65, %s66
      %p75 = scmp.eq.s32.totalorder %s20, 0
      %p76 = por %p74, %p75
      %p77 = scmp.ne.s32.totalorder %s65, %s66
      %p78 = scmp.eq.s32.totalorder %s21, 1
      %p79 = por %p77, %p78
      %p81 = scmp.ne.s32.totalorder %s66, %s80
      %p82 = scmp.eq.s32.totalorder %s21, 0
      %p83 = por %p81, %p82
      %s85 = sadd.s32 %s84, 1
      %p88 = scmp.eq.s32.totalorder %s15, 1
      %p89 = scmp.ne.s32.totalorder %s84, %s86
      %p90 = scmp.eq.s32.totalorder %s15, 0
      %p91 = por %p89, %p90
      %p92 = scmp.ne.s32.totalorder %s84, %s86
      %p93 = scmp.eq.s32.totalorder %s20, 1
      %p94 = por %p92, %p93
      %p95 = scmp.ne.s32.totalorder %s86, %s87
      %p96 = scmp.eq.s32.totalorder %s20, 0
      %p97 = por %p95, %p96
      %p98 = scmp.ne.s32.totalorder %s86, %s87
      %p99 = scmp.eq.s32.totalorder %s21, 1
      %p100 = por %p98, %p99
      %p102 = scmp.ne.s32.totalorder %s87, %s101
      %p103 = scmp.eq.s32.totalorder %s21, 0
      %p104 = por %p102, %p103
      %s105 = ssub.s32 %s22, %s34
      %s106 = ssub.s32 %s23, %s30
      %s107 = sor.u32 %s105, %s106
      %p108 = scmp.eq.s32.totalorder %s107, 0
      %s110 = sadd.s32 %s109, 1
      %s111 = scalar_select %p108, %s109, %s110
      %p114 = pneg %p108
      %p115 = scmp.eq.s32.totalorder %s15, 1
      %p116 = por %p114, %p115
      %p117 = scmp.ne.s32.totalorder %s109, %s112
      %p118 = scmp.eq.s32.totalorder %s15, 0
      %p119 = por %p117, %p118
      %p120 = scmp.ne.s32.totalorder %s109, %s112
      %p121 = scmp.eq.s32.totalorder %s20, 1
      %p122 = por %p120, %p121
      %p123 = scmp.ne.s32.totalorder %s112, %s113
      %p124 = scmp.eq.s32.totalorder %s20, 0
      %p125 = por %p123, %p124
      %p126 = scmp.ne.s32.totalorder %s112, %s113
      %p127 = scmp.eq.s32.totalorder %s21, 1
      %p128 = por %p126, %p127
      %p130 = scmp.ne.s32.totalorder %s113, %s129
      %p131 = scmp.eq.s32.totalorder %s21, 0
      %p132 = por %p130, %p131
      %p133 = scmp.le.s32.totalorder 1, %s15
      %p134 = scmp.lt.s32.totalorder %s15, 3
      %p135 = pnand %p133, %p134
      %p136 = pneg %p135
      // Predicated region
      $region9: #{tpu_custom_call.1} parent=5 // pred_check
        _
      $region10: #{tpu_custom_call.1} parent=5 // pred_check_branch
        %138 = sbr.rel (%p135) target = $region12
      $region11: #{tpu_custom_call.1} parent=5 // pred_region
        %s139 = ssub.s32 %s15, 1
        // Predicated region
        $region13: #{tpu_custom_call.1} parent=11 // pred_check
          %p140 = pneg %p76
        $region14: #{tpu_custom_call.1} parent=11 // pred_check_branch
          %142 = sbr.rel (%p140) target = $region16
        $region15: #{tpu_custom_call.1} parent=11 // pred_region
          _
        $region16: #{tpu_custom_call.1} parent=11 // pred_fallthru
          _
        // Predicated region
        $region17: #{tpu_custom_call.1} parent=11 // pred_check
          %p143 = pneg %p97
        $region18: #{tpu_custom_call.1} parent=11 // pred_check_branch
          %145 = sbr.rel (%p143) target = $region20
        $region19: #{tpu_custom_call.1} parent=11 // pred_region
          _
        $region20: #{tpu_custom_call.1} parent=11 // pred_fallthru
          _
      $region12: #{tpu_custom_call.1} parent=5 // pred_fallthru
        _
      %p146 = scmp.lt.s32.totalorder %s15, 2
      // Predicated region
      $region21: #{tpu_custom_call.1} parent=5 // pred_check
        %p147 = pneg %p146
      $region22: #{tpu_custom_call.1} parent=5 // pred_check_branch
        %149 = sbr.rel (%p147) target = $region24
      $region23: #{tpu_custom_call.1} parent=5 // pred_region
        // Predicated region
        $region25: #{tpu_custom_call.1} parent=23 // pred_check
          %p150 = pneg %p49
        $region26: #{tpu_custom_call.1} parent=23 // pred_check_branch
          %152 = sbr.rel (%p150) target = $region28
        $region27: #{tpu_custom_call.1} parent=23 // pred_region
          %s153 = sand.u32 %s39, 1
          %s154 = scalar_lea.sflag [#allocation3], %s153
          %s155 = sand.u32 %s39, 1
          %s156 = smul.addr %s155, 32
          %s157 = scalar_lea.vmem [#allocation2], %s156
          %s159 = ssub.s32 512, 512
          %160 = vsyncadd %s154, %s159
          %s161 = smul.addr %s22, 4
          %s162 = sadd.s32 %s23, %s161
          %s163 = smul.addr %s162, 128
          %s164 = scalar_lea.hbm %s0, %s163
          %s165 = sshll.u32 %s157, 4
          %s166 = int_to_ptr.vmem [resolvable:$true] %s165
          %171 = dma.hbm_to_vmem [thread:$0]  %s164, 512, %s166, %s154, 128, 128, 8
        $region28: #{tpu_custom_call.1} parent=23 // pred_fallthru
          _
      $region24: #{tpu_custom_call.1} parent=5 // pred_fallthru
        _
      %p172 = scmp.le.s32.totalorder 1, %s15
      %p173 = scmp.lt.s32.totalorder %s15, 3
      %p174 = pnand %p172, %p173
      %p175 = pneg %p174
      // Predicated region
      $region29: #{tpu_custom_call.1} parent=5 // pred_check
        _
      $region30: #{tpu_custom_call.1} parent=5 // pred_check_branch
        %177 = sbr.rel (%p174) target = $region32
      $region31: #{tpu_custom_call.1} parent=5 // pred_region
        %s178 = ssub.s32 %s15, 1
        %s179 = sand.u32 %s42, 1
        %s180 = scalar_lea.sflag [#allocation3], %s179
        %s181 = sand.u32 %s42, 1
        %s182 = smul.addr %s181, 32
        %s183 = scalar_lea.vmem [#allocation2], %s182
        // Predicated region
        $region33: #{tpu_custom_call.1} parent=31 // pred_check
          %p184 = pneg %p55
        $region34: #{tpu_custom_call.1} parent=31 // pred_check_branch
          %186 = sbr.rel (%p184) target = $region36
        $region35: #{tpu_custom_call.1} parent=31 // pred_region
          %187 = dma.done %s180, 512
        $region36: #{tpu_custom_call.1} parent=31 // pred_fallthru
          _
        %s188 = sand.u32 %s42, 1
        %s189 = scalar_lea.sflag [#allocation3], %s188
        %s190 = sand.u32 %s42, 1
        %s191 = smul.addr %s190, 32
        %s192 = scalar_lea.vmem [#allocation2], %s191
        %p193 = pneg %p55
        %p194 = pneg %p52
        %p195 = pneg %p76
        %p196 = pneg %p73
        %p197 = pneg %p97
        %p198 = pneg %p94
        %p199 = pneg %p125
        %p200 = pneg %p122
        %s201 = sand.u32 %s112, 1
        %s202 = scalar_lea.sflag [#allocation4], %s201
        %s203 = sand.u32 %s112, 1
        %s204 = smul.addr %s203, 32
        %s205 = scalar_lea.vmem [#allocation5], %s204
        %v206 = vld [vmem:[%s183] sm:$0xff]
        %v207 = vld [vmem:[%s183 + $0x8] sm:$0xff]
        %v208 = vld [vmem:[%s183 + $0x10] sm:$0xff]
        %v209 = vld [vmem:[%s183 + $0x18] sm:$0xff]
        %214 = vrot.lane.b32.xlu0 %v206, 127
        %v215 = vpop.permute.xlu0 %214
        %216 = vrot.lane.b32.xlu0 %v207, 127
        %v217 = vpop.permute.xlu0 %216
        %218 = vrot.lane.b32.xlu0 %v208, 127
        %v219 = vpop.permute.xlu0 %218
        %220 = vrot.lane.b32.xlu0 %v209, 127
        %v221 = vpop.permute.xlu0 %220
        %226 = vrot.lane.b32.xlu0 %v206, 126
        %v227 = vpop.permute.xlu0 %226
        %228 = vrot.lane.b32.xlu0 %v207, 126
        %v229 = vpop.permute.xlu0 %228
        %230 = vrot.lane.b32.xlu0 %v208, 126
        %v231 = vpop.permute.xlu0 %230
        %232 = vrot.lane.b32.xlu0 %v209, 126
        %v233 = vpop.permute.xlu0 %232
        %238 = vrot.lane.b32.xlu0 %v206, 125
        %v239 = vpop.permute.xlu0 %238
        %240 = vrot.lane.b32.xlu0 %v207, 125
        %v241 = vpop.permute.xlu0 %240
        %242 = vrot.lane.b32.xlu0 %v208, 125
        %v243 = vpop.permute.xlu0 %242
        %244 = vrot.lane.b32.xlu0 %v209, 125
        %v245 = vpop.permute.xlu0 %244
        %250 = vrot.lane.b32.xlu0 %v206, 124
        %v251 = vpop.permute.xlu0 %250
        %252 = vrot.lane.b32.xlu0 %v207, 124
        %v253 = vpop.permute.xlu0 %252
        %254 = vrot.lane.b32.xlu0 %v208, 124
        %v255 = vpop.permute.xlu0 %254
        %256 = vrot.lane.b32.xlu0 %v209, 124
        %v257 = vpop.permute.xlu0 %256
        %262 = vrot.lane.b32.xlu0 %v206, 123
        %v263 = vpop.permute.xlu0 %262
        %264 = vrot.lane.b32.xlu0 %v207, 123
        %v265 = vpop.permute.xlu0 %264
        %266 = vrot.lane.b32.xlu0 %v208, 123
        %v267 = vpop.permute.xlu0 %266
        %268 = vrot.lane.b32.xlu0 %v209, 123
        %v269 = vpop.permute.xlu0 %268
        %274 = vrot.lane.b32.xlu0 %v206, 122
        %v275 = vpop.permute.xlu0 %274
        %276 = vrot.lane.b32.xlu0 %v207, 122
        %v277 = vpop.permute.xlu0 %276
        %278 = vrot.lane.b32.xlu0 %v208, 122
        %v279 = vpop.permute.xlu0 %278
        %280 = vrot.lane.b32.xlu0 %v209, 122
        %v281 = vpop.permute.xlu0 %280
        %286 = vrot.lane.b32.xlu0 %v206, 121
        %v287 = vpop.permute.xlu0 %286
        %288 = vrot.lane.b32.xlu0 %v207, 121
        %v289 = vpop.permute.xlu0 %288
        %290 = vrot.lane.b32.xlu0 %v208, 121
        %v291 = vpop.permute.xlu0 %290
        %292 = vrot.lane.b32.xlu0 %v209, 121
        %v293 = vpop.permute.xlu0 %292
        %vm298 = vcmask 7168
        %v299 = vsel %vm298, %v206, %v215
        %v300 = vsel %vm298, %v207, %v217
        %v301 = vsel %vm298, %v208, %v219
        %v302 = vsel %vm298, %v209, %v221
        %vm303 = vcmask 15360
        %v304 = vsel %vm303, %v299, %v227
        %v305 = vsel %vm303, %v300, %v229
        %v306 = vsel %vm303, %v301, %v231
        %v307 = vsel %vm303, %v302, %v233
        %vm308 = vcmask 23552
        %v309 = vsel %vm308, %v304, %v239
        %v310 = vsel %vm308, %v305, %v241
        %v311 = vsel %vm308, %v306, %v243
        %v312 = vsel %vm308, %v307, %v245
        %vm313 = vcmask 31744
        %v314 = vsel %vm313, %v309, %v251
        %v315 = vsel %vm313, %v310, %v253
        %v316 = vsel %vm313, %v311, %v255
        %v317 = vsel %vm313, %v312, %v257
        %vm318 = vcmask 39936
        %v319 = vsel %vm318, %v314, %v263
        %v320 = vsel %vm318, %v315, %v265
        %v321 = vsel %vm318, %v316, %v267
        %v322 = vsel %vm318, %v317, %v269
        %vm323 = vcmask 48128
        %v324 = vsel %vm323, %v319, %v275
        %v325 = vsel %vm323, %v320, %v277
        %v326 = vsel %vm323, %v321, %v279
        %v327 = vsel %vm323, %v322, %v281
        %vm328 = vcmask 56320
        %v329 = vsel %vm328, %v324, %v287
        %v330 = vsel %vm328, %v325, %v289
        %v331 = vsel %vm328, %v326, %v291
        %v332 = vsel %vm328, %v327, %v293
        %v333 = vld [vmem:[%s1] sm:$0xf]
        %v336 = vunpack.c.l.s4 1966171168
        %v337 = vunpack.c.0.s8 %v336
        %v338 = vlaneseq
        %v339 = vshrl.u32 %v338, 7
        %v340 = vsub.s32 %v337, %v339
        %v341 = vrot.slane %v333, %v340
        %v342 = vcombine.high %v341, %v341
        %v344 = vunpack.c.l.s4 1966171168
        %v345 = vunpack.c.0.s8 %v344
        %v346 = vlaneseq
        %v347 = vshrl.u32 %v346, 7
        %v348 = vsub.s32 %v345, %v347
        %v349 = vrot.slane %v341, %v348
        %v351 = vunpack.c.l.s4 1966171168
        %v352 = vunpack.c.0.s8 %v351
        %v353 = vlaneseq
        %v354 = vshrl.u32 %v353, 7
        %v355 = vsub.s32 %v352, %v354
        %v356 = vrot.slane %v342, %v355
        %v357 = vcombine.high %v349, %v349
        %v358 = vcombine.high %v356, %v356
        %v359 = vlaneseq
        %v360 = vshrl.u32 %v359, 7
        %v361 = vsub.s32 0, %v360
        %v362 = vrot.slane %v349, %v361
        %v363 = vlaneseq
        %v364 = vshrl.u32 %v363, 7
        %v365 = vsub.s32 0, %v364
        %v366 = vrot.slane %v356, %v365
        %v367 = vlaneseq
        %v368 = vshrl.u32 %v367, 7
        %v369 = vsub.s32 0, %v368
        %v370 = vrot.slane %v357, %v369
        %v371 = vlaneseq
        %v372 = vshrl.u32 %v371, 7
        %v373 = vsub.s32 0, %v372
        %v374 = vrot.slane %v358, %v373
        %375 = vset.pattern.permute.xlu0 0
        %376 = vperm.xlu0 %375, %v362
        %v377 = vpop.permute.xlu0 %376
        %379 = vset.pattern.permute.xlu0 0
        %380 = vperm.xlu0 %379, %v366
        %v381 = vpop.permute.xlu0 %380
        %383 = vset.pattern.permute.xlu0 0
        %384 = vperm.xlu0 %383, %v370
        %v385 = vpop.permute.xlu0 %384
        %387 = vset.pattern.permute.xlu0 0
        %388 = vperm.xlu0 %387, %v374
        %v389 = vpop.permute.xlu0 %388
        %v391 = vmul.f32 %v377, %v329
        %v392 = vmul.f32 %v381, %v329
        %v393 = vmul.f32 %v385, %v329
        %v394 = vmul.f32 %v389, %v329
        %v395 = vadd.f32 %v391, 0.0
        %v396 = vadd.f32 %v392, 0.0
        %v397 = vadd.f32 %v393, 0.0
        %v398 = vadd.f32 %v394, 0.0
        %399 = vset.pattern.permute.xlu0 1
        %400 = vperm.xlu0 %399, %v362
        %v401 = vpop.permute.xlu0 %400
        %403 = vset.pattern.permute.xlu0 1
        %404 = vperm.xlu0 %403, %v366
        %v405 = vpop.permute.xlu0 %404
        %407 = vset.pattern.permute.xlu0 1
        %408 = vperm.xlu0 %407, %v370
        %v409 = vpop.permute.xlu0 %408
        %411 = vset.pattern.permute.xlu0 1
        %412 = vperm.xlu0 %411, %v374
        %v413 = vpop.permute.xlu0 %412
        %v415 = vmul.f32 %v401, %v330
        %v416 = vmul.f32 %v405, %v330
        %v417 = vmul.f32 %v409, %v330
        %v418 = vmul.f32 %v413, %v330
        %v419 = vadd.f32 %v395, %v415
        %v420 = vadd.f32 %v396, %v416
        %v421 = vadd.f32 %v397, %v417
        %v422 = vadd.f32 %v398, %v418
        %423 = vset.pattern.permute.xlu0 2
        %424 = vperm.xlu0 %423, %v362
        %v425 = vpop.permute.xlu0 %424
        %427 = vset.pattern.permute.xlu0 2
        %428 = vperm.xlu0 %427, %v366
        %v429 = vpop.permute.xlu0 %428
        %431 = vset.pattern.permute.xlu0 2
        %432 = vperm.xlu0 %431, %v370
        %v433 = vpop.permute.xlu0 %432
        %435 = vset.pattern.permute.xlu0 2
        %436 = vperm.xlu0 %435, %v374
        %v437 = vpop.permute.xlu0 %436
        %v439 = vmul.f32 %v425, %v331
        %v440 = vmul.f32 %v429, %v331
        %v441 = vmul.f32 %v433, %v331
        %v442 = vmul.f32 %v437, %v331
        %v443 = vadd.f32 %v419, %v439
        %v444 = vadd.f32 %v420, %v440
        %v445 = vadd.f32 %v421, %v441
        %v446 = vadd.f32 %v422, %v442
        %447 = vset.pattern.permute.xlu0 3
        %448 = vperm.xlu0 %447, %v362
        %v449 = vpop.permute.xlu0 %448
        %451 = vset.pattern.permute.xlu0 3
        %452 = vperm.xlu0 %451, %v366
        %v453 = vpop.permute.xlu0 %452
        %455 = vset.pattern.permute.xlu0 3
        %456 = vperm.xlu0 %455, %v370
        %v457 = vpop.permute.xlu0 %456
        %459 = vset.pattern.permute.xlu0 3
        %460 = vperm.xlu0 %459, %v374
        %v461 = vpop.permute.xlu0 %460
        %v463 = vmul.f32 %v449, %v332
        %v464 = vmul.f32 %v453, %v332
        %v465 = vmul.f32 %v457, %v332
        %v466 = vmul.f32 %v461, %v332
        %v467 = vadd.f32 %v443, %v463
        %v468 = vadd.f32 %v444, %v464
        %v469 = vadd.f32 %v445, %v465
        %v470 = vadd.f32 %v446, %v466
        %v471 = vld [vmem:[%s2] sm:$0x1]
        %v472 = vld [vmem:[%s2 + $0x1] sm:$0x1]
        %v473 = vld [vmem:[%s2 + $0x2] sm:$0x1]
        %v474 = vld [vmem:[%s2 + $0x3] sm:$0x1]
        %v479 = vlaneseq
        %v480 = vshrl.u32 %v479, 7
        %v481 = vsub.s32 0, %v480
        %v482 = vrot.slane %v471, %v481
        %v483 = vlaneseq
        %v484 = vshrl.u32 %v483, 7
        %v485 = vsub.s32 0, %v484
        %v486 = vrot.slane %v472, %v485
        %v487 = vlaneseq
        %v488 = vshrl.u32 %v487, 7
        %v489 = vsub.s32 0, %v488
        %v490 = vrot.slane %v473, %v489
        %v491 = vlaneseq
        %v492 = vshrl.u32 %v491, 7
        %v493 = vsub.s32 0, %v492
        %v494 = vrot.slane %v474, %v493
        %495 = vset.pattern.permute.xlu0 0
        %496 = vperm.xlu0 %495, %v482
        %v497 = vpop.permute.xlu0 %496
        %499 = vset.pattern.permute.xlu0 0
        %500 = vperm.xlu0 %499, %v486
        %v501 = vpop.permute.xlu0 %500
        %503 = vset.pattern.permute.xlu0 0
        %504 = vperm.xlu0 %503, %v490
        %v505 = vpop.permute.xlu0 %504
        %507 = vset.pattern.permute.xlu0 0
        %508 = vperm.xlu0 %507, %v494
        %v509 = vpop.permute.xlu0 %508
        %v511 = vadd.f32 %v467, %v497
        %v512 = vadd.f32 %v468, %v501
        %v513 = vadd.f32 %v469, %v505
        %v514 = vadd.f32 %v470, %v509
        %v515 = vmax.f32 %v511, 0.0
        %v516 = vmax.f32 %v512, 0.0
        %v517 = vmax.f32 %v513, 0.0
        %v518 = vmax.f32 %v514, 0.0
        %vm519 = vcmask 64512
        %520 = vst.msk [vmem:[%s205] sm:$0xff] %vm519, %v515
        %521 = vst.msk [vmem:[%s205 + $0x8] sm:$0xff] %vm519, %v516
        %522 = vst.msk [vmem:[%s205 + $0x10] sm:$0xff] %vm519, %v517
        %523 = vst.msk [vmem:[%s205 + $0x18] sm:$0xff] %vm519, %v518
        %s524 = sand.u32 %s112, 1
        %s525 = scalar_lea.sflag [#allocation4], %s524
        %s526 = sand.u32 %s112, 1
        %s527 = smul.addr %s526, 32
        %s528 = scalar_lea.vmem [#allocation5], %s527
        // Predicated region
        $region37: #{tpu_custom_call.1} parent=31 // pred_check
          %p529 = pneg %p122
        $region38: #{tpu_custom_call.1} parent=31 // pred_check_branch
          %531 = sbr.rel (%p529) target = $region40
        $region39: #{tpu_custom_call.1} parent=31 // pred_region
          %s533 = ssub.s32 512, 512
          %534 = vsyncadd %s525, %s533
          %s535 = smul.addr %s24, 4
          %s536 = sadd.s32 %s25, %s535
          %s537 = smul.addr %s536, 128
          %s538 = scalar_lea.hbm %s3, %s537
          %s539 = sshll.u32 %s528, 4
          %s540 = int_to_ptr.vmem [resolvable:$true] %s539
          %545 = dma.vmem_to_hbm [thread:$0]  %s540, 512, %s538, %s525, 128, 128, 8
        $region40: #{tpu_custom_call.1} parent=31 // pred_fallthru
          _
      $region32: #{tpu_custom_call.1} parent=5 // pred_fallthru
        _
      %p546 = scmp.le.s32.totalorder 2, %s15
      // Predicated region
      $region41: #{tpu_custom_call.1} parent=5 // pred_check
        %p547 = pneg %p546
      $region42: #{tpu_custom_call.1} parent=5 // pred_check_branch
        %549 = sbr.rel (%p547) target = $region44
      $region43: #{tpu_custom_call.1} parent=5 // pred_region
        %s550 = ssub.s32 %s15, 2
        // Predicated region
        $region45: #{tpu_custom_call.1} parent=43 // pred_check
          %p551 = pneg %p128
        $region46: #{tpu_custom_call.1} parent=43 // pred_check_branch
          %553 = sbr.rel (%p551) target = $region48
        $region47: #{tpu_custom_call.1} parent=43 // pred_region
          %s554 = sand.u32 %s113, 1
          %s555 = scalar_lea.sflag [#allocation4], %s554
          %s556 = sand.u32 %s113, 1
          %s557 = smul.addr %s556, 32
          %s558 = scalar_lea.vmem [#allocation5], %s557
          %559 = dma.done %s555, 512
        $region48: #{tpu_custom_call.1} parent=43 // pred_fallthru
          _
      $region44: #{tpu_custom_call.1} parent=5 // pred_fallthru
        _
    $region6: #{tpu_custom_call.1} parent=1 // loop_footer
      %s19 = sadd.s32 1, %s15
    $region7: #{tpu_custom_call.1} parent=1 // loop_footer_branch
      %14 = sbr.rel target = $region3
    $region8: #{tpu_custom_call.1} parent=1 // loop_exit
      _
    %560 = vsyncpa [#allocation3], 1
    %s561 = scalar_lea.sflag [#allocation3], 1
    %562 = vsyncpa %s561, 1
    %563 = vsyncpa [#allocation4], 1
    %s564 = scalar_lea.sflag [#allocation4], 1
    %565 = vsyncpa %s564, 1

</llo_original>
